<compile_context>
chip_gen: v7x
topology: tpu7x:2x2x1
jax: 0.10.0
libtpu: 0.0.40
codegen_flags: <defaults>
</compile_context>

<pallas_src>
import functools
import math

import jax
import jax.numpy as jnp
from jax.experimental import pallas as pl
from jax.experimental.pallas import tpu as pltpu


def _round_up(x, m):
    return (x + m - 1) // m * m


# ---------------------------------------------------------------------------
# In-kernel math helpers
# ---------------------------------------------------------------------------
def _mish(x):
    # mish(x) = x * tanh(softplus(x)).  With e = exp(x):
    #   tanh(log(1+e)) = e*(2+e) / (2 + e*(2+e))
    # Single transcendental, no cancellation; clamp avoids overflow (for
    # x > 20, tanh(softplus(x)) == 1 within f32 anyway).  mish(0) == 0, so the
    # zero-padded lanes stay exactly zero through the network.
    e = jnp.exp(jnp.minimum(x, 20.0))
    n = e * (2.0 + e)
    return x * n / (2.0 + n)


# ---------------------------------------------------------------------------
# Kernel: fused two-head critic MLP, packed lane-dense output
# ---------------------------------------------------------------------------
def critic_kernel(state_ref, action_ref, w1_ref, w234_ref, b_ref, out_ref,
                  *, state_dim, num_atoms):
    wdt = w1_ref.dtype                     # matmul operand dtype (f32 or bf16)
    b = b_ref[...]                         # (4, W) packed f32 biases

    # Layer 1: concat([state, action]) @ W1 == state @ W1[:sd] + action @ W1[sd:]
    h = jnp.dot(state_ref[...].astype(wdt), w1_ref[:state_dim],
                preferred_element_type=jnp.float32)
    h = h + jnp.dot(action_ref[...].astype(wdt), w1_ref[state_dim:],
                    preferred_element_type=jnp.float32)
    h = _mish(h + b[0:1])

    # Layers 2 / 3: fused block-diagonal (W, W) weights; padded lanes stay 0.
    h = _mish(jnp.dot(h.astype(wdt), w234_ref[0],
                      preferred_element_type=jnp.float32) + b[1:2])
    h = _mish(jnp.dot(h.astype(wdt), w234_ref[1],
                      preferred_element_type=jnp.float32) + b[2:3])

    # Layer 4: packed logits — head-1 in lanes [0, A), head-2 in lanes [A, 2A).
    logits = jnp.dot(h.astype(wdt), w234_ref[2],
                     preferred_element_type=jnp.float32) + b[3:4]

    # Two softmaxes (one per head) in a single pass over the packed, lane-dense
    # logits using iota masks; exact division so rows sum to exactly 1.
    A = num_atoms
    lane = jax.lax.broadcasted_iota(jnp.int32, logits.shape, 1)
    in_h1 = lane < A
    in_any = lane < 2 * A
    neg_inf = jnp.float32(-jnp.inf)

    m1 = jnp.max(jnp.where(in_h1, logits, neg_inf), axis=-1, keepdims=True)
    m2 = jnp.max(jnp.where(in_any & ~in_h1, logits, neg_inf),
                 axis=-1, keepdims=True)
    m = jnp.where(in_h1, m1, m2)

    e = jnp.exp(jnp.where(in_any, logits - m, neg_inf))   # padded lanes -> 0
    s1 = jnp.sum(jnp.where(in_h1, e, 0.0), axis=-1, keepdims=True)
    s2 = jnp.sum(e, axis=-1, keepdims=True) - s1          # lanes >= 2A are 0
    denom = jnp.where(in_h1, s1, s2)

    out_ref[...] = (e / denom).astype(out_ref.dtype)       # single unmasked store


# ---------------------------------------------------------------------------
# Parameter construction / packing
# ---------------------------------------------------------------------------
def init_torch_style_params(key, state_dim, action_dim, hidden_dim, num_atoms):
    """PyTorch nn.Linear default init: U(-1/sqrt(fan_in), +1/sqrt(fan_in)).
    Returns two lists (q1, q2) of (W, b) with torch layout W:(out,in), b:(out,)."""
    in_dim = state_dim + action_dim
    dims = [(hidden_dim, in_dim), (hidden_dim, hidden_dim),
            (hidden_dim, hidden_dim), (num_atoms, hidden_dim)]
    heads = []
    for _ in range(2):
        layers = []
        for (fo, fi) in dims:
            key, kw, kb = jax.random.split(key, 3)
            bound = 1.0 / math.sqrt(fi)
            w = jax.random.uniform(kw, (fo, fi), jnp.float32, -bound, bound)
            bvec = jax.random.uniform(kb, (fo,), jnp.float32, -bound, bound)
            layers.append((w, bvec))
        heads.append(layers)
    return heads[0], heads[1]


def pack_critic_params(q1_layers, q2_layers, state_dim, num_atoms,
                       weights_dtype=jnp.float32):
    """Fuse the two heads into one weight set, zero-padded to a lane-dense
    width W (multiple of 128):
      w1   : (state_dim + action_dim, W)   — layer-1 weights of both heads
      w234 : (3, W, W)                      — block-diagonal layers 2/3/4
      b_all: (4, W)                         — biases, f32
    Torch (out, in) weights are transposed to (in, out).
    Use weights_dtype=jnp.bfloat16 on v6e/v7x for MXU-native operands."""
    def t(w):
        return jnp.asarray(w, jnp.float32).T

    (w1_1, b1_1), (w2_1, b2_1), (w3_1, b3_1), (w4_1, b4_1) = q1_layers
    (w1_2, b1_2), (w2_2, b2_2), (w3_2, b3_2), (w4_2, b4_2) = q2_layers

    hidden = w1_1.shape[0]
    in_dim = w1_1.shape[1]
    H2 = 2 * hidden
    A = num_atoms
    W = max(128, _round_up(max(H2, 2 * A), 128))

    w1 = jnp.zeros((in_dim, W), jnp.float32)
    w1 = w1.at[:, :hidden].set(t(w1_1)).at[:, hidden:H2].set(t(w1_2))

    def blk(a, c):
        m = jnp.zeros((W, W), jnp.float32)
        return m.at[:hidden, :hidden].set(t(a)).at[hidden:H2, hidden:H2].set(t(c))

    w4 = jnp.zeros((W, W), jnp.float32)
    w4 = w4.at[:hidden, :A].set(t(w4_1)).at[hidden:H2, A:2 * A].set(t(w4_2))

    w234 = jnp.stack([blk(w2_1, w2_2), blk(w3_1, w3_2), w4], axis=0)  # (3, W, W)

    b_all = jnp.zeros((4, W), jnp.float32)
    b_all = (b_all
             .at[0, :H2].set(jnp.concatenate([b1_1, b1_2]))
             .at[1, :H2].set(jnp.concatenate([b2_1, b2_2]))
             .at[2, :H2].set(jnp.concatenate([b3_1, b3_2]))
             .at[3, :2 * A].set(jnp.concatenate([b4_1, b4_2])))

    return w1.astype(weights_dtype), w234.astype(weights_dtype), b_all


# ---------------------------------------------------------------------------
# Wrapper
# ---------------------------------------------------------------------------
def critic_forward(state, action, packed_params, num_atoms, *, block_rows=1024):
    w1, w234, b_all = packed_params
    state = state.astype(jnp.float32)
    action = action.astype(jnp.float32)

    B, state_dim = state.shape
    action_dim = action.shape[1]
    A = num_atoms
    W = w1.shape[1]

    # Row tile: multiple of 8 (f32 sublanes), big by default (per-step overhead
    # ~0.35us, total VMEM << limit), but capped so large batches get >= 2
    # "parallel" grid steps (v7x has 2 TensorCores; no effect on v5e/v6e).
    Bp8 = _round_up(B, 8)
    TB = min(block_rows, max(8, _round_up(-(-Bp8 // 2), 8)))
    TB = min(TB, Bp8)
    Bp = _round_up(B, TB)
    if Bp != B:
        pad = Bp - B
        state = jnp.pad(state, ((0, pad), (0, 0)))
        action = jnp.pad(action, ((0, pad), (0, 0)))

    kernel = functools.partial(critic_kernel, state_dim=state_dim, num_atoms=A)

    out = pl.pallas_call(
        kernel,
        out_shape=jax.ShapeDtypeStruct((Bp, W), jnp.float32),
        grid_spec=pl.GridSpec(
            grid=(Bp // TB,),
            in_specs=[
                pl.BlockSpec((TB, state_dim), lambda i: (i, 0)),
                pl.BlockSpec((TB, action_dim), lambda i: (i, 0)),
                pl.BlockSpec(w1.shape, lambda i: (0, 0)),      # VMEM-resident
                pl.BlockSpec(w234.shape, lambda i: (0, 0, 0)),  # VMEM-resident
                pl.BlockSpec(b_all.shape, lambda i: (0, 0)),    # VMEM-resident
            ],
            out_specs=pl.BlockSpec((TB, W), lambda i: (i, 0)),
        ),
        compiler_params=pltpu.CompilerParams(
            dimension_semantics=("parallel",)),
    )(state, action, w1, w234, b_all)

    return out[:B, :A], out[:B, A:2 * A]


# ---------------------------------------------------------------------------
# Pure-JAX reference of the original torch module math (for validation)
# ---------------------------------------------------------------------------
def _ref_forward(state, action, q1_layers, q2_layers):
    x = jnp.concatenate([state, action], axis=-1).astype(jnp.float32)

    def head(layers):
        h = x
        for li, (w, b) in enumerate(layers):
            h = h @ w.T + b
            if li < len(layers) - 1:
                h = h * jnp.tanh(jax.nn.softplus(h))  # Mish
        return jax.nn.softmax(h, axis=-1)

    return head(q1_layers), head(q2_layers)


if __name__ == "__main__":
    # Small shapes consistent with the module's forward.
    B, state_dim, action_dim, hidden_dim, num_atoms = 8, 16, 8, 32, 5

    key = jax.random.PRNGKey(0)
    key, ks, ka, kp = jax.random.split(key, 4)
    state = jax.random.normal(ks, (B, state_dim), jnp.float32)
    action = jax.random.normal(ka, (B, action_dim), jnp.float32)

    q1_layers, q2_layers = init_torch_style_params(
        kp, state_dim, action_dim, hidden_dim, num_atoms)
    # weights_dtype=jnp.bfloat16 is the v6e/v7x fast path; f32 here so the
    # output matches the f32 reference at tight tolerance.
    packed = pack_critic_params(q1_layers, q2_layers, state_dim, num_atoms,
                                weights_dtype=jnp.float32)

    fwd = jax.jit(functools.partial(critic_forward, num_atoms=num_atoms))
    q1_dist, q2_dist = fwd(state, action, packed)
    jax.block_until_ready((q1_dist, q2_dist))

    # Sanity: shapes, softmax rows sum to 1, matches pure-JAX reference.
    assert q1_dist.shape == (B, num_atoms) and q2_dist.shape == (B, num_atoms)
    assert jnp.allclose(jnp.sum(q1_dist, axis=-1), 1.0, atol=1e-5)
    assert jnp.allclose(jnp.sum(q2_dist, axis=-1), 1.0, atol=1e-5)
    r1, r2 = _ref_forward(state, action, q1_layers, q2_layers)
    assert jnp.allclose(q1_dist, r1, atol=1e-4, rtol=1e-4)
    assert jnp.allclose(q2_dist, r2, atol=1e-4, rtol=1e-4)

    print("KERNEL_OK")
</pallas_src>

<mosaic_0001>
module attributes {stable_mosaic.version = 11 : i64} {
  func.func @critic_kernel(%arg0: i32, %arg1: memref<8x16xf32, #tpu.memory_space<vmem>>, %arg2: memref<8x8xf32, #tpu.memory_space<vmem>>, %arg3: memref<24x128xf32, #tpu.memory_space<vmem>>, %arg4: memref<3x128x128xf32, #tpu.memory_space<vmem>>, %arg5: memref<4x128xf32, #tpu.memory_space<vmem>>, %arg6: memref<8x128xf32, #tpu.memory_space<vmem>>) attributes {dimension_semantics = [#tpu.dimension_semantics<parallel>], iteration_bounds = array<i64: 1>, scalar_prefetch = 0 : i64, scratch_operands = 0 : i64, tpu.core_type = #tpu.core_type<tc>, window_params = [{transform_indices = @transform_0, window_bounds = array<i64: 8, 16>}, {transform_indices = @transform_1, window_bounds = array<i64: 8, 8>}, {pipeline_mode = #tpu.pipeline_mode<synchronous>, transform_indices = @transform_2, window_bounds = array<i64: 24, 128>}, {pipeline_mode = #tpu.pipeline_mode<synchronous>, transform_indices = @transform_3, window_bounds = array<i64: 3, 128, 128>}, {pipeline_mode = #tpu.pipeline_mode<synchronous>, transform_indices = @transform_4, window_bounds = array<i64: 4, 128>}, {transform_indices = @transform_5, window_bounds = array<i64: 8, 128>}]} {
    %c0 = arith.constant 0 : index
    %c0_0 = arith.constant 0 : index
    %0 = vector.load %arg5[%c0, %c0_0] : memref<4x128xf32, #tpu.memory_space<vmem>>, vector<4x128xf32>
    %c0_1 = arith.constant 0 : index
    %c0_2 = arith.constant 0 : index
    %1 = vector.load %arg1[%c0_1, %c0_2] : memref<8x16xf32, #tpu.memory_space<vmem>>, vector<8x16xf32>
    %c0_3 = arith.constant 0 : index
    %c0_4 = arith.constant 0 : index
    %2 = vector.load %arg3[%c0_3, %c0_4] : memref<24x128xf32, #tpu.memory_space<vmem>>, vector<16x128xf32>
    %cst = arith.constant dense<0.000000e+00> : vector<8x128xf32>
    %3 = tpu.matmul %1, %2, %cst {dimension_numbers = #tpu.dot_dimension_numbers<[1], [0], [0], [1], [0, 0, 1, 1], [], []>} : vector<8x16xf32>, vector<16x128xf32>, vector<8x128xf32> -> vector<8x128xf32>
    %c0_5 = arith.constant 0 : index
    %c0_6 = arith.constant 0 : index
    %4 = vector.load %arg2[%c0_5, %c0_6] : memref<8x8xf32, #tpu.memory_space<vmem>>, vector<8x8xf32>
    %c16 = arith.constant 16 : index
    %c0_7 = arith.constant 0 : index
    %5 = vector.load %arg3[%c16, %c0_7] : memref<24x128xf32, #tpu.memory_space<vmem>>, vector<8x128xf32>
    %cst_8 = arith.constant dense<0.000000e+00> : vector<8x128xf32>
    %6 = tpu.matmul %4, %5, %cst_8 {dimension_numbers = #tpu.dot_dimension_numbers<[1], [0], [0], [1], [0, 0, 1, 1], [], []>} : vector<8x8xf32>, vector<8x128xf32>, vector<8x128xf32> -> vector<8x128xf32>
    %7 = arith.addf %3, %6 : vector<8x128xf32>
    %8 = vector.extract_strided_slice %0 {offsets = [0, 0], sizes = [1, 128], strides = [1, 1]} : vector<4x128xf32> to vector<1x128xf32>
    %9 = vector.broadcast %8 : vector<1x128xf32> to vector<8x128xf32>
    %10 = arith.addf %7, %9 : vector<8x128xf32>
    %cst_9 = arith.constant 2.000000e+01 : f32
    %11 = vector.broadcast %cst_9 : f32 to vector<8x128xf32>
    %12 = arith.minimumf %10, %11 : vector<8x128xf32>
    %13 = math.exp %12 : vector<8x128xf32>
    %cst_10 = arith.constant 2.000000e+00 : f32
    %14 = vector.broadcast %cst_10 : f32 to vector<8x128xf32>
    %15 = arith.addf %14, %13 : vector<8x128xf32>
    %16 = arith.mulf %13, %15 : vector<8x128xf32>
    %17 = arith.mulf %10, %16 : vector<8x128xf32>
    %cst_11 = arith.constant 2.000000e+00 : f32
    %18 = vector.broadcast %cst_11 : f32 to vector<8x128xf32>
    %19 = arith.addf %18, %16 : vector<8x128xf32>
    %20 = arith.divf %17, %19 : vector<8x128xf32>
    %c0_12 = arith.constant 0 : index
    %c0_13 = arith.constant 0 : index
    %c0_14 = arith.constant 0 : index
    %21 = vector.load %arg4[%c0_12, %c0_13, %c0_14] : memref<3x128x128xf32, #tpu.memory_space<vmem>>, vector<1x128x128xf32>
    %22 = vector.shape_cast %21 : vector<1x128x128xf32> to vector<128x128xf32>
    %cst_15 = arith.constant dense<0.000000e+00> : vector<8x128xf32>
    %23 = tpu.matmul %20, %22, %cst_15 {dimension_numbers = #tpu.dot_dimension_numbers<[1], [0], [0], [1], [0, 0, 1, 1], [], []>} : vector<8x128xf32>, vector<128x128xf32>, vector<8x128xf32> -> vector<8x128xf32>
    %24 = vector.extract_strided_slice %0 {offsets = [1, 0], sizes = [1, 128], strides = [1, 1]} : vector<4x128xf32> to vector<1x128xf32>
    %25 = vector.broadcast %24 : vector<1x128xf32> to vector<8x128xf32>
    %26 = arith.addf %23, %25 : vector<8x128xf32>
    %cst_16 = arith.constant 2.000000e+01 : f32
    %27 = vector.broadcast %cst_16 : f32 to vector<8x128xf32>
    %28 = arith.minimumf %26, %27 : vector<8x128xf32>
    %29 = math.exp %28 : vector<8x128xf32>
    %cst_17 = arith.constant 2.000000e+00 : f32
    %30 = vector.broadcast %cst_17 : f32 to vector<8x128xf32>
    %31 = arith.addf %30, %29 : vector<8x128xf32>
    %32 = arith.mulf %29, %31 : vector<8x128xf32>
    %33 = arith.mulf %26, %32 : vector<8x128xf32>
    %cst_18 = arith.constant 2.000000e+00 : f32
    %34 = vector.broadcast %cst_18 : f32 to vector<8x128xf32>
    %35 = arith.addf %34, %32 : vector<8x128xf32>
    %36 = arith.divf %33, %35 : vector<8x128xf32>
    %c1 = arith.constant 1 : index
    %c0_19 = arith.constant 0 : index
    %c0_20 = arith.constant 0 : index
    %37 = vector.load %arg4[%c1, %c0_19, %c0_20] : memref<3x128x128xf32, #tpu.memory_space<vmem>>, vector<1x128x128xf32>
    %38 = vector.shape_cast %37 : vector<1x128x128xf32> to vector<128x128xf32>
    %cst_21 = arith.constant dense<0.000000e+00> : vector<8x128xf32>
    %39 = tpu.matmul %36, %38, %cst_21 {dimension_numbers = #tpu.dot_dimension_numbers<[1], [0], [0], [1], [0, 0, 1, 1], [], []>} : vector<8x128xf32>, vector<128x128xf32>, vector<8x128xf32> -> vector<8x128xf32>
    %40 = vector.extract_strided_slice %0 {offsets = [2, 0], sizes = [1, 128], strides = [1, 1]} : vector<4x128xf32> to vector<1x128xf32>
    %41 = vector.broadcast %40 : vector<1x128xf32> to vector<8x128xf32>
    %42 = arith.addf %39, %41 : vector<8x128xf32>
    %cst_22 = arith.constant 2.000000e+01 : f32
    %43 = vector.broadcast %cst_22 : f32 to vector<8x128xf32>
    %44 = arith.minimumf %42, %43 : vector<8x128xf32>
    %45 = math.exp %44 : vector<8x128xf32>
    %cst_23 = arith.constant 2.000000e+00 : f32
    %46 = vector.broadcast %cst_23 : f32 to vector<8x128xf32>
    %47 = arith.addf %46, %45 : vector<8x128xf32>
    %48 = arith.mulf %45, %47 : vector<8x128xf32>
    %49 = arith.mulf %42, %48 : vector<8x128xf32>
    %cst_24 = arith.constant 2.000000e+00 : f32
    %50 = vector.broadcast %cst_24 : f32 to vector<8x128xf32>
    %51 = arith.addf %50, %48 : vector<8x128xf32>
    %52 = arith.divf %49, %51 : vector<8x128xf32>
    %c2 = arith.constant 2 : index
    %c0_25 = arith.constant 0 : index
    %c0_26 = arith.constant 0 : index
    %53 = vector.load %arg4[%c2, %c0_25, %c0_26] : memref<3x128x128xf32, #tpu.memory_space<vmem>>, vector<1x128x128xf32>
    %54 = vector.shape_cast %53 : vector<1x128x128xf32> to vector<128x128xf32>
    %cst_27 = arith.constant dense<0.000000e+00> : vector<8x128xf32>
    %55 = tpu.matmul %52, %54, %cst_27 {dimension_numbers = #tpu.dot_dimension_numbers<[1], [0], [0], [1], [0, 0, 1, 1], [], []>} : vector<8x128xf32>, vector<128x128xf32>, vector<8x128xf32> -> vector<8x128xf32>
    %56 = vector.extract_strided_slice %0 {offsets = [3, 0], sizes = [1, 128], strides = [1, 1]} : vector<4x128xf32> to vector<1x128xf32>
    %57 = vector.broadcast %56 : vector<1x128xf32> to vector<8x128xf32>
    %58 = arith.addf %55, %57 : vector<8x128xf32>
    %59 = tpu.iota {dimensions = array<i32: 1>} : vector<8x128xi32>
    %c5_i32 = arith.constant 5 : i32
    %60 = vector.broadcast %c5_i32 : i32 to vector<8x128xi32>
    %61 = arith.cmpi slt, %59, %60 : vector<8x128xi32>
    %c10_i32 = arith.constant 10 : i32
    %62 = vector.broadcast %c10_i32 : i32 to vector<8x128xi32>
    %63 = arith.cmpi slt, %59, %62 : vector<8x128xi32>
    %cst_28 = arith.constant 0xFF800000 : f32
    %64 = vector.broadcast %cst_28 : f32 to vector<8x128xf32>
    %65 = arith.select %61, %58, %64 : vector<8x128xi1>, vector<8x128xf32>
    %cst_29 = arith.constant dense<0xFF800000> : vector<8xf32>
    %66 = vector.multi_reduction <maximumf>, %65, %cst_29 [1] : vector<8x128xf32> to vector<8xf32>
    %67 = vector.shape_cast %66 : vector<8xf32> to vector<8x1xf32>
    %cst_30 = arith.constant dense<true> : vector<8x128xi1>
    %68 = arith.xori %61, %cst_30 : vector<8x128xi1>
    %69 = arith.andi %63, %68 : vector<8x128xi1>
    %cst_31 = arith.constant 0xFF800000 : f32
    %70 = vector.broadcast %cst_31 : f32 to vector<8x128xf32>
    %71 = arith.select %69, %58, %70 : vector<8x128xi1>, vector<8x128xf32>
    %cst_32 = arith.constant dense<0xFF800000> : vector<8xf32>
    %72 = vector.multi_reduction <maximumf>, %71, %cst_32 [1] : vector<8x128xf32> to vector<8xf32>
    %73 = vector.shape_cast %72 : vector<8xf32> to vector<8x1xf32>
    %74 = vector.shape_cast %67 : vector<8x1xf32> to vector<8x1xf32>
    %75 = vector.broadcast %74 : vector<8x1xf32> to vector<8x128xf32>
    %76 = vector.shape_cast %73 : vector<8x1xf32> to vector<8x1xf32>
    %77 = vector.broadcast %76 : vector<8x1xf32> to vector<8x128xf32>
    %78 = arith.select %61, %75, %77 : vector<8x128xi1>, vector<8x128xf32>
    %79 = arith.subf %58, %78 : vector<8x128xf32>
    %cst_33 = arith.constant 0xFF800000 : f32
    %80 = vector.broadcast %cst_33 : f32 to vector<8x128xf32>
    %81 = arith.select %63, %79, %80 : vector<8x128xi1>, vector<8x128xf32>
    %82 = math.exp %81 : vector<8x128xf32>
    %cst_34 = arith.constant 0.000000e+00 : f32
    %83 = vector.broadcast %cst_34 : f32 to vector<8x128xf32>
    %84 = arith.select %61, %82, %83 : vector<8x128xi1>, vector<8x128xf32>
    %cst_35 = arith.constant dense<0.000000e+00> : vector<8xf32>
    %85 = vector.multi_reduction <add>, %84, %cst_35 [1] : vector<8x128xf32> to vector<8xf32>
    %86 = vector.shape_cast %85 : vector<8xf32> to vector<8x1xf32>
    %cst_36 = arith.constant dense<0.000000e+00> : vector<8xf32>
    %87 = vector.multi_reduction <add>, %82, %cst_36 [1] : vector<8x128xf32> to vector<8xf32>
    %88 = vector.shape_cast %87 : vector<8xf32> to vector<8x1xf32>
    %89 = arith.subf %88, %86 : vector<8x1xf32>
    %90 = vector.shape_cast %86 : vector<8x1xf32> to vector<8x1xf32>
    %91 = vector.broadcast %90 : vector<8x1xf32> to vector<8x128xf32>
    %92 = vector.shape_cast %89 : vector<8x1xf32> to vector<8x1xf32>
    %93 = vector.broadcast %92 : vector<8x1xf32> to vector<8x128xf32>
    %94 = arith.select %61, %91, %93 : vector<8x128xi1>, vector<8x128xf32>
    %95 = arith.divf %82, %94 : vector<8x128xf32>
    %c0_37 = arith.constant 0 : index
    %c0_38 = arith.constant 0 : index
    %96 = vector.load %arg6[%c0_37, %c0_38] : memref<8x128xf32, #tpu.memory_space<vmem>>, vector<8x128xf32>
    tpu.vector_store %arg6[%c0_37, %c0_38], %95 {strides = array<i32>} : memref<8x128xf32, #tpu.memory_space<vmem>>, vector<8x128xf32>,
    return
  }
  func.func @transform_0(%arg0: i32) -> (i32, i32) {
    %c0_i32 = arith.constant 0 : i32
    %c0_i32_0 = arith.constant 0 : i32
    return %arg0, %c0_i32 : i32, i32
  }
  func.func @transform_1(%arg0: i32) -> (i32, i32) {
    %c0_i32 = arith.constant 0 : i32
    %c0_i32_0 = arith.constant 0 : i32
    return %arg0, %c0_i32 : i32, i32
  }
  func.func @transform_2(%arg0: i32) -> (i32, i32) {
    %c0_i32 = arith.constant 0 : i32
    %c0_i32_0 = arith.constant 0 : i32
    %c0_i32_1 = arith.constant 0 : i32
    return %c0_i32, %c0_i32_0 : i32, i32
  }
  func.func @transform_3(%arg0: i32) -> (i32, i32, i32) {
    %c0_i32 = arith.constant 0 : i32
    %c0_i32_0 = arith.constant 0 : i32
    %c0_i32_1 = arith.constant 0 : i32
    %c0_i32_2 = arith.constant 0 : i32
    return %c0_i32, %c0_i32_0, %c0_i32_1 : i32, i32, i32
  }
  func.func @transform_4(%arg0: i32) -> (i32, i32) {
    %c0_i32 = arith.constant 0 : i32
    %c0_i32_0 = arith.constant 0 : i32
    %c0_i32_1 = arith.constant 0 : i32
    return %c0_i32, %c0_i32_0 : i32, i32
  }
  func.func @transform_5(%arg0: i32) -> (i32, i32) {
    %c0_i32 = arith.constant 0 : i32
    %c0_i32_0 = arith.constant 0 : i32
    return %arg0, %c0_i32 : i32, i32
  }
}

</mosaic_0001>

<llo_original>
// kernel: critic_forward.1
$region0: #{critic_forward.1}
  #allocation0 [shape = 'u32[]', space=smem, size = 0x4, offset = 0x4, fixed_abs, tag = 'smem constant byte address 0x4 - core index']
  #allocation1 [shape = 'u32[144,128]{1,0:T(1,128)}', space=vmem, size = 0x12000, scoped, tag = 'internal scratch']
  %s0 = inlined_call_operand.hbm [shape: f32[8,16], index: 0, kind: input, shape index: {}]
  %s1 = inlined_call_operand.hbm [shape: f32[8,8], index: 1, kind: input, shape index: {}]
  %s2 = inlined_call_operand.hbm [shape: f32[24,128], index: 2, kind: input, shape index: {}]
  %s3 = inlined_call_operand.hbm [shape: f32[3,128,128], index: 3, kind: input, shape index: {}]
  %s4 = inlined_call_operand.vmem [shape: f32[4,128], index: 4, kind: input, shape index: {}]
  %s5 = inlined_call_operand.vmem [shape: f32[8,128], index: 5, kind: output, shape index: {}]
  %s6 = sld [smem:[#allocation0]]
  $region46: #{critic_forward.1} parent=0
    _
  %s8 = ssub.s32 1, %s6
  %s9 = scalar_select 0, %s8, %s6
  $region1: #{critic_forward.1} parent=0
    #allocation2 [shape = 'u8[4096]{0}', space=vmem, size = 0x1000, scoped, tag = 'input window, operand 0, single buffered']
    #allocation3 [shape = 's32[1]{0}', space=sflag, size = 0x4, scoped, tag = 'scoped memory for critic_forward.1']
    #allocation4 [shape = 'u8[4096]{0}', space=vmem, size = 0x1000, scoped, tag = 'input window, operand 1, single buffered']
    #allocation5 [shape = 's32[1]{0}', space=sflag, size = 0x4, scoped, tag = 'scoped memory for critic_forward.1']
    #allocation6 [shape = 'u8[12288]{0}', space=vmem, size = 0x3000, scoped, tag = 'input window, operand 2, single buffered']
    #allocation7 [shape = 'u8[196608]{0}', space=vmem, size = 0x30000, scoped, tag = 'input window, operand 3, single buffered']
    #allocation8 [shape = 's32[1]{0}', space=sflag, size = 0x4, scoped, tag = 'scoped memory for critic_forward.1']
    %10 = vsyncpa [#allocation3], 0
    %11 = vsyncpa [#allocation5], 0
    %12 = vsyncpa [#allocation8], 0
    // Predicated region
    $region2: #{critic_forward.1} parent=1 // pred_check
      _
    $region3: #{critic_forward.1} parent=1 // pred_check_branch
      %14 = sbr.rel (0) target = $region5
    $region4: #{critic_forward.1} parent=1 // pred_region
      %s16 = ssub.s32 128, 128
      %17 = vsyncadd [#allocation3], %s16
      %s19 = sshll.u32 [#allocation2], 4
      %s20 = int_to_ptr.vmem [resolvable:$true] %s19
      %22 = dma.hbm_to_vmem [thread:$0]  %s0, 128, %s20, [#allocation3]
    $region5: #{critic_forward.1} parent=1 // pred_fallthru
      _
    // Predicated region
    $region6: #{critic_forward.1} parent=1 // pred_check
      _
    $region7: #{critic_forward.1} parent=1 // pred_check_branch
      %24 = sbr.rel (0) target = $region9
    $region8: #{critic_forward.1} parent=1 // pred_region
      %s26 = ssub.s32 128, 128
      %27 = vsyncadd [#allocation5], %s26
      %s29 = sshll.u32 [#allocation4], 4
      %s30 = int_to_ptr.vmem [resolvable:$true] %s29
      %32 = dma.hbm_to_vmem [thread:$0]  %s1, 128, %s30, [#allocation5]
    $region9: #{critic_forward.1} parent=1 // pred_fallthru
      _
    // Predicated region
    $region10: #{critic_forward.1} parent=1 // pred_check
      _
    $region11: #{critic_forward.1} parent=1 // pred_check_branch
      %34 = sbr.rel (0) target = $region13
    $region12: #{critic_forward.1} parent=1 // pred_region
      %s36 = ssub.s32 384, 384
      %37 = vsyncadd [#allocation5], %s36
      %s38 = sshll.u32 [#allocation6], 4
      %s39 = int_to_ptr.vmem [resolvable:$true] %s38
      %44 = dma.hbm_to_vmem [thread:$0]  %s2, 384, %s39, [#allocation5], 128, 128, 8
    $region13: #{critic_forward.1} parent=1 // pred_fallthru
      _
    // Predicated region
    $region14: #{critic_forward.1} parent=1 // pred_check
      _
    $region15: #{critic_forward.1} parent=1 // pred_check_branch
      %46 = sbr.rel (0) target = $region17
    $region16: #{critic_forward.1} parent=1 // pred_region
      %s48 = ssub.s32 6144, 6144
      %49 = vsyncadd [#allocation8], %s48
      %s50 = sshll.u32 [#allocation7], 4
      %s51 = int_to_ptr.vmem [resolvable:$true] %s50
      %56 = dma.hbm_to_vmem [thread:$0]  %s3, 6144, %s51, [#allocation8], 128, 128, 8
    $region17: #{critic_forward.1} parent=1 // pred_fallthru
      _
    // Predicated region
    $region18: #{critic_forward.1} parent=1 // pred_check
      _
    $region19: #{critic_forward.1} parent=1 // pred_check_branch
      %58 = sbr.rel (0) target = $region21
    $region20: #{critic_forward.1} parent=1 // pred_region
      _
    $region21: #{critic_forward.1} parent=1 // pred_fallthru
      _
    // Predicated region
    $region22: #{critic_forward.1} parent=1 // pred_check
      _
    $region23: #{critic_forward.1} parent=1 // pred_check_branch
      %60 = sbr.rel (0) target = $region25
    $region24: #{critic_forward.1} parent=1 // pred_region
      %61 = dma.done [#allocation3], 128
    $region25: #{critic_forward.1} parent=1 // pred_fallthru
      _
    // Predicated region
    $region26: #{critic_forward.1} parent=1 // pred_check
      _
    $region27: #{critic_forward.1} parent=1 // pred_check_branch
      %63 = sbr.rel (0) target = $region29
    $region28: #{critic_forward.1} parent=1 // pred_region
      %64 = dma.done [#allocation5], 128
    $region29: #{critic_forward.1} parent=1 // pred_fallthru
      _
    // Predicated region
    $region30: #{critic_forward.1} parent=1 // pred_check
      _
    $region31: #{critic_forward.1} parent=1 // pred_check_branch
      %66 = sbr.rel (0) target = $region33
    $region32: #{critic_forward.1} parent=1 // pred_region
      %67 = dma.done [#allocation5], 384
    $region33: #{critic_forward.1} parent=1 // pred_fallthru
      _
    // Predicated region
    $region34: #{critic_forward.1} parent=1 // pred_check
      _
    $region35: #{critic_forward.1} parent=1 // pred_check_branch
      %69 = sbr.rel (0) target = $region37
    $region36: #{critic_forward.1} parent=1 // pred_region
      %70 = dma.done [#allocation8], 6144
    $region37: #{critic_forward.1} parent=1 // pred_fallthru
      _
    %v71 = vld [vmem:[%s4] sm:$0xf]
    %v72 = vld [vmem:[#allocation2] sm:$0xff]
    %v73 = vld [vmem:[#allocation6] sm:$0xff]
    %v74 = vld [vmem:[#allocation6 + $0x8] sm:$0xff]
    %v75 = vld [vmem:[#allocation4] sm:$0xff]
    %v76 = vld [vmem:[#allocation6 + $0x10] sm:$0xff]
    %vm77 = vcmask 64512
    %v79 = vsel %vm77, %v75, 0
    %81 = vmatprep.subr.mxu0 0.0
    %82 = vmatpush1.msra.mxu0 %v76
    %83 = vmatprep.subr.mxu0 0.0
    %84 = vmatpush1.msra.mxu0 0.0
    %85 = vmatprep.subr.mxu0 0.0
    %86 = vmatpush1.msra.mxu0 0.0
    %87 = vmatprep.subr.mxu0 0.0
    %88 = vmatpush1.msra.mxu0 0.0
    %89 = vmatprep.subr.mxu0 0.0
    %90 = vmatpush1.msra.mxu0 0.0
    %91 = vmatprep.subr.mxu0 0.0
    %92 = vmatpush1.msra.mxu0 0.0
    %93 = vmatprep.subr.mxu0 0.0
    %94 = vmatpush1.msra.mxu0 0.0
    %95 = vmatprep.subr.mxu0 0.0
    %96 = vmatpush1.msra.mxu0 0.0
    %97 = vmatprep.subr.mxu0 0.0
    %98 = vmatpush1.msra.mxu0 0.0
    %99 = vmatprep.subr.mxu0 0.0
    %100 = vmatpush1.msra.mxu0 0.0
    %101 = vmatprep.subr.mxu0 0.0
    %102 = vmatpush1.msra.mxu0 0.0
    %103 = vmatprep.subr.mxu0 0.0
    %104 = vmatpush1.msra.mxu0 0.0
    %105 = vmatprep.subr.mxu0 0.0
    %106 = vmatpush1.msra.mxu0 0.0
    %107 = vmatprep.subr.mxu0 0.0
    %108 = vmatpush1.msra.mxu0 0.0
    %109 = vmatprep.subr.mxu0 0.0
    %110 = vmatpush1.msra.mxu0 0.0
    %111 = vmatprep.subr.mxu0 0.0
    %112 = vmatpush1.msra.mxu0 0.0
    %113 = vmatprep.subr.mxu0 0.0
    %114 = vmatpush1.msra.mxu0 0.0
    %115 = vmatprep.subr.mxu0 0.0
    %116 = vmatpush1.msra.mxu0 0.0
    %117 = vmatprep.subr.mxu0 0.0
    %118 = vmatpush1.msra.mxu0 0.0
    %119 = vmatprep.subr.mxu0 0.0
    %120 = vmatpush1.msra.mxu0 0.0
    %121 = vmatprep.subr.mxu0 0.0
    %122 = vmatpush1.msra.mxu0 0.0
    %123 = vmatprep.subr.mxu0 0.0
    %124 = vmatpush1.msra.mxu0 0.0
    %125 = vmatprep.subr.mxu0 0.0
    %126 = vmatpush1.msra.mxu0 0.0
    %127 = vmatprep.subr.mxu0 0.0
    %128 = vmatpush1.msra.mxu0 0.0
    %129 = vmatprep.subr.mxu0 0.0
    %130 = vmatpush1.msra.mxu0 0.0
    %131 = vmatprep.subr.mxu0 0.0
    %132 = vmatpush1.msra.mxu0 0.0
    %133 = vmatprep.subr.mxu0 0.0
    %134 = vmatpush1.msra.mxu0 0.0
    %135 = vmatprep.subr.mxu0 0.0
    %136 = vmatpush1.msra.mxu0 0.0
    %137 = vmatprep.subr.mxu0 0.0
    %138 = vmatpush1.msra.mxu0 0.0
    %139 = vmatprep.subr.mxu0 0.0
    %140 = vmatpush1.msra.mxu0 0.0
    %141 = vmatprep.subr.mxu0 0.0
    %142 = vmatpush1.msra.mxu0 0.0
    %143 = vmatprep.subr.mxu0 0.0
    %144 = vmatpush1.msra.mxu0 0.0
    %145 = vmatprep.mubr.f32.mxu0 0.0
    %146 = vmatmul.mubr.f32.gmra.mrb[0].mxu0 %v79
    %v147 = vpop.f32.mrb[0].mxu0
    %v148 = vadd.f32 0.0, %v147
    %v149 = vpop.f32.mrb[0].mxu0
    %150 = vdwg.mxu0
    %vm151 = vcmask 130048
    %v153 = vsel %vm151, %v72, 0
    %155 = vmatprep.subr.mxu0 0.0
    %156 = vmatpush1.msra.mxu0 %v73
    %157 = vmatprep.subr.mxu0 0.0
    %158 = vmatpush1.msra.mxu0 %v74
    %159 = vmatprep.subr.mxu0 0.0
    %160 = vmatpush1.msra.mxu0 0.0
    %161 = vmatprep.subr.mxu0 0.0
    %162 = vmatpush1.msra.mxu0 0.0
    %163 = vmatprep.subr.mxu0 0.0
    %164 = vmatpush1.msra.mxu0 0.0
    %165 = vmatprep.subr.mxu0 0.0
    %166 = vmatpush1.msra.mxu0 0.0
    %167 = vmatprep.subr.mxu0 0.0
    %168 = vmatpush1.msra.mxu0 0.0
    %169 = vmatprep.subr.mxu0 0.0
    %170 = vmatpush1.msra.mxu0 0.0
    %171 = vmatprep.subr.mxu0 0.0
    %172 = vmatpush1.msra.mxu0 0.0
    %173 = vmatprep.subr.mxu0 0.0
    %174 = vmatpush1.msra.mxu0 0.0
    %175 = vmatprep.subr.mxu0 0.0
    %176 = vmatpush1.msra.mxu0 0.0
    %177 = vmatprep.subr.mxu0 0.0
    %178 = vmatpush1.msra.mxu0 0.0
    %179 = vmatprep.subr.mxu0 0.0
    %180 = vmatpush1.msra.mxu0 0.0
    %181 = vmatprep.subr.mxu0 0.0
    %182 = vmatpush1.msra.mxu0 0.0
    %183 = vmatprep.subr.mxu0 0.0
    %184 = vmatpush1.msra.mxu0 0.0
    %185 = vmatprep.subr.mxu0 0.0
    %186 = vmatpush1.msra.mxu0 0.0
    %187 = vmatprep.subr.mxu0 0.0
    %188 = vmatpush1.msra.mxu0 0.0
    %189 = vmatprep.subr.mxu0 0.0
    %190 = vmatpush1.msra.mxu0 0.0
    %191 = vmatprep.subr.mxu0 0.0
    %192 = vmatpush1.msra.mxu0 0.0
    %193 = vmatprep.subr.mxu0 0.0
    %194 = vmatpush1.msra.mxu0 0.0
    %195 = vmatprep.subr.mxu0 0.0
    %196 = vmatpush1.msra.mxu0 0.0
    %197 = vmatprep.subr.mxu0 0.0
    %198 = vmatpush1.msra.mxu0 0.0
    %199 = vmatprep.subr.mxu0 0.0
    %200 = vmatpush1.msra.mxu0 0.0
    %201 = vmatprep.subr.mxu0 0.0
    %202 = vmatpush1.msra.mxu0 0.0
    %203 = vmatprep.subr.mxu0 0.0
    %204 = vmatpush1.msra.mxu0 0.0
    %205 = vmatprep.subr.mxu0 0.0
    %206 = vmatpush1.msra.mxu0 0.0
    %207 = vmatprep.subr.mxu0 0.0
    %208 = vmatpush1.msra.mxu0 0.0
    %209 = vmatprep.subr.mxu0 0.0
    %210 = vmatpush1.msra.mxu0 0.0
    %211 = vmatprep.subr.mxu0 0.0
    %212 = vmatpush1.msra.mxu0 0.0
    %213 = vmatprep.subr.mxu0 0.0
    %214 = vmatpush1.msra.mxu0 0.0
    %215 = vmatprep.subr.mxu0 0.0
    %216 = vmatpush1.msra.mxu0 0.0
    %217 = vmatprep.subr.mxu0 0.0
    %218 = vmatpush1.msra.mxu0 0.0
    %219 = vmatprep.mubr.f32.mxu0 0.0
    %220 = vmatmul.mubr.f32.gmra.mrb[0].mxu0 %v153
    %v221 = vpop.f32.mrb[0].mxu0
    %v222 = vadd.f32 %v148, %v221
    %v223 = vpop.f32.mrb[0].mxu0
    %224 = vdwg.mxu0
    %v225 = vlaneseq
    %v226 = vshrl.u32 %v225, 7
    %v227 = vsub.s32 0, %v226
    %v228 = vrot.slane %v71, %v227
    %v229 = vadd.f32 %v222, %v228
    %v230 = vmin.f32 %v229, 20.0
    %v231 = vmul.f32 %v230, 1.442695
    %v232 = vpow.pop %v231
    %v233 = vadd.f32 %v232, 2.0
    %v234 = vmul.f32 %v232, %v233
    %v235 = vmul.f32 %v229, %v234
    %v236 = vadd.f32 %v234, 2.0
    %v237 = vrcp.pop %v236
    %v238 = vmul.f32 %v235, %v237
    %v239 = vld [vmem:[#allocation7] sm:$0xff]
    %v240 = vld [vmem:[#allocation7 + $0x8] sm:$0xff]
    %v241 = vld [vmem:[#allocation7 + $0x10] sm:$0xff]
    %v242 = vld [vmem:[#allocation7 + $0x18] sm:$0xff]
    %v243 = vld [vmem:[#allocation7 + $0x20] sm:$0xff]
    %v244 = vld [vmem:[#allocation7 + $0x28] sm:$0xff]
    %v245 = vld [vmem:[#allocation7 + $0x30] sm:$0xff]
    %v246 = vld [vmem:[#allocation7 + $0x38] sm:$0xff]
    %v247 = vld [vmem:[#allocation7 + $0x40] sm:$0xff]
    %v248 = vld [vmem:[#allocation7 + $0x48] sm:$0xff]
    %v249 = vld [vmem:[#allocation7 + $0x50] sm:$0xff]
    %v250 = vld [vmem:[#allocation7 + $0x58] sm:$0xff]
    %v251 = vld [vmem:[#allocation7 + $0x60] sm:$0xff]
    %v252 = vld [vmem:[#allocation7 + $0x68] sm:$0xff]
    %v253 = vld [vmem:[#allocation7 + $0x70] sm:$0xff]
    %v254 = vld [vmem:[#allocation7 + $0x78] sm:$0xff]
    %v255 = vlaneseq
    %v256 = vshrl.u32 %v255, 7
    %v257 = vsub.s32 1, %v256
    %v258 = vrot.slane %v71, %v257
    %259 = vmatprep.subr.mxu0 0.0
    %260 = vmatpush1.msra.mxu0 %v239
    %261 = vmatprep.subr.mxu0 0.0
    %262 = vmatpush1.msra.mxu0 %v240
    %263 = vmatprep.subr.mxu0 0.0
    %264 = vmatpush1.msra.mxu0 %v241
    %265 = vmatprep.subr.mxu0 0.0
    %266 = vmatpush1.msra.mxu0 %v242
    %267 = vmatprep.subr.mxu0 0.0
    %268 = vmatpush1.msra.mxu0 %v243
    %269 = vmatprep.subr.mxu0 0.0
    %270 = vmatpush1.msra.mxu0 %v244
    %271 = vmatprep.subr.mxu0 0.0
    %272 = vmatpush1.msra.mxu0 %v245
    %273 = vmatprep.subr.mxu0 0.0
    %274 = vmatpush1.msra.mxu0 %v246
    %275 = vmatprep.subr.mxu0 0.0
    %276 = vmatpush1.msra.mxu0 %v247
    %277 = vmatprep.subr.mxu0 0.0
    %278 = vmatpush1.msra.mxu0 %v248
    %279 = vmatprep.subr.mxu0 0.0
    %280 = vmatpush1.msra.mxu0 %v249
    %281 = vmatprep.subr.mxu0 0.0
    %282 = vmatpush1.msra.mxu0 %v250
    %283 = vmatprep.subr.mxu0 0.0
    %284 = vmatpush1.msra.mxu0 %v251
    %285 = vmatprep.subr.mxu0 0.0
    %286 = vmatpush1.msra.mxu0 %v252
    %287 = vmatprep.subr.mxu0 0.0
    %288 = vmatpush1.msra.mxu0 %v253
    %289 = vmatprep.subr.mxu0 0.0
    %290 = vmatpush1.msra.mxu0 %v254
    %291 = vmatprep.subr.mxu0 0.0
    %292 = vmatpush1.msra.mxu0 0.0
    %293 = vmatprep.subr.mxu0 0.0
    %294 = vmatpush1.msra.mxu0 0.0
    %295 = vmatprep.subr.mxu0 0.0
    %296 = vmatpush1.msra.mxu0 0.0
    %297 = vmatprep.subr.mxu0 0.0
    %298 = vmatpush1.msra.mxu0 0.0
    %299 = vmatprep.subr.mxu0 0.0
    %300 = vmatpush1.msra.mxu0 0.0
    %301 = vmatprep.subr.mxu0 0.0
    %302 = vmatpush1.msra.mxu0 0.0
    %303 = vmatprep.subr.mxu0 0.0
    %304 = vmatpush1.msra.mxu0 0.0
    %305 = vmatprep.subr.mxu0 0.0
    %306 = vmatpush1.msra.mxu0 0.0
    %307 = vmatprep.subr.mxu0 0.0
    %308 = vmatpush1.msra.mxu0 0.0
    %309 = vmatprep.subr.mxu0 0.0
    %310 = vmatpush1.msra.mxu0 0.0
    %311 = vmatprep.subr.mxu0 0.0
    %312 = vmatpush1.msra.mxu0 0.0
    %313 = vmatprep.subr.mxu0 0.0
    %314 = vmatpush1.msra.mxu0 0.0
    %315 = vmatprep.subr.mxu0 0.0
    %316 = vmatpush1.msra.mxu0 0.0
    %317 = vmatprep.subr.mxu0 0.0
    %318 = vmatpush1.msra.mxu0 0.0
    %319 = vmatprep.subr.mxu0 0.0
    %320 = vmatpush1.msra.mxu0 0.0
    %321 = vmatprep.subr.mxu0 0.0
    %322 = vmatpush1.msra.mxu0 0.0
    %323 = vmatprep.mubr.f32.mxu0 0.0
    %324 = vmatmul.mubr.f32.gmra.mrb[0].mxu0 %v238
    %v325 = vpop.f32.mrb[0].mxu0
    %v326 = vadd.f32 %v258, %v325
    %v327 = vpop.f32.mrb[0].mxu0
    %328 = vdwg.mxu0
    %v329 = vmin.f32 %v326, 20.0
    %v330 = vmul.f32 %v329, 1.442695
    %v331 = vpow.pop %v330
    %v332 = vadd.f32 %v331, 2.0
    %v333 = vmul.f32 %v331, %v332
    %v334 = vmul.f32 %v326, %v333
    %v335 = vadd.f32 %v333, 2.0
    %v336 = vrcp.pop %v335
    %v337 = vmul.f32 %v334, %v336
    %s338 = scalar_lea.vmem [#allocation7], 128
    %v339 = vld [vmem:[%s338] sm:$0xff]
    %v340 = vld [vmem:[%s338 + $0x8] sm:$0xff]
    %v341 = vld [vmem:[%s338 + $0x10] sm:$0xff]
    %v342 = vld [vmem:[%s338 + $0x18] sm:$0xff]
    %v343 = vld [vmem:[%s338 + $0x20] sm:$0xff]
    %v344 = vld [vmem:[%s338 + $0x28] sm:$0xff]
    %v345 = vld [vmem:[%s338 + $0x30] sm:$0xff]
    %v346 = vld [vmem:[%s338 + $0x38] sm:$0xff]
    %v347 = vld [vmem:[%s338 + $0x40] sm:$0xff]
    %v348 = vld [vmem:[%s338 + $0x48] sm:$0xff]
    %v349 = vld [vmem:[%s338 + $0x50] sm:$0xff]
    %v350 = vld [vmem:[%s338 + $0x58] sm:$0xff]
    %v351 = vld [vmem:[%s338 + $0x60] sm:$0xff]
    %v352 = vld [vmem:[%s338 + $0x68] sm:$0xff]
    %v353 = vld [vmem:[%s338 + $0x70] sm:$0xff]
    %v354 = vld [vmem:[%s338 + $0x78] sm:$0xff]
    %v355 = vlaneseq
    %v356 = vshrl.u32 %v355, 7
    %v357 = vsub.s32 2, %v356
    %v358 = vrot.slane %v71, %v357
    %359 = vmatprep.subr.mxu0 0.0
    %360 = vmatpush1.msra.mxu0 %v339
    %361 = vmatprep.subr.mxu0 0.0
    %362 = vmatpush1.msra.mxu0 %v340
    %363 = vmatprep.subr.mxu0 0.0
    %364 = vmatpush1.msra.mxu0 %v341
    %365 = vmatprep.subr.mxu0 0.0
    %366 = vmatpush1.msra.mxu0 %v342
    %367 = vmatprep.subr.mxu0 0.0
    %368 = vmatpush1.msra.mxu0 %v343
    %369 = vmatprep.subr.mxu0 0.0
    %370 = vmatpush1.msra.mxu0 %v344
    %371 = vmatprep.subr.mxu0 0.0
    %372 = vmatpush1.msra.mxu0 %v345
    %373 = vmatprep.subr.mxu0 0.0
    %374 = vmatpush1.msra.mxu0 %v346
    %375 = vmatprep.subr.mxu0 0.0
    %376 = vmatpush1.msra.mxu0 %v347
    %377 = vmatprep.subr.mxu0 0.0
    %378 = vmatpush1.msra.mxu0 %v348
    %379 = vmatprep.subr.mxu0 0.0
    %380 = vmatpush1.msra.mxu0 %v349
    %381 = vmatprep.subr.mxu0 0.0
    %382 = vmatpush1.msra.mxu0 %v350
    %383 = vmatprep.subr.mxu0 0.0
    %384 = vmatpush1.msra.mxu0 %v351
    %385 = vmatprep.subr.mxu0 0.0
    %386 = vmatpush1.msra.mxu0 %v352
    %387 = vmatprep.subr.mxu0 0.0
    %388 = vmatpush1.msra.mxu0 %v353
    %389 = vmatprep.subr.mxu0 0.0
    %390 = vmatpush1.msra.mxu0 %v354
    %391 = vmatprep.subr.mxu0 0.0
    %392 = vmatpush1.msra.mxu0 0.0
    %393 = vmatprep.subr.mxu0 0.0
    %394 = vmatpush1.msra.mxu0 0.0
    %395 = vmatprep.subr.mxu0 0.0
    %396 = vmatpush1.msra.mxu0 0.0
    %397 = vmatprep.subr.mxu0 0.0
    %398 = vmatpush1.msra.mxu0 0.0
    %399 = vmatprep.subr.mxu0 0.0
    %400 = vmatpush1.msra.mxu0 0.0
    %401 = vmatprep.subr.mxu0 0.0
    %402 = vmatpush1.msra.mxu0 0.0
    %403 = vmatprep.subr.mxu0 0.0
    %404 = vmatpush1.msra.mxu0 0.0
    %405 = vmatprep.subr.mxu0 0.0
    %406 = vmatpush1.msra.mxu0 0.0
    %407 = vmatprep.subr.mxu0 0.0
    %408 = vmatpush1.msra.mxu0 0.0
    %409 = vmatprep.subr.mxu0 0.0
    %410 = vmatpush1.msra.mxu0 0.0
    %411 = vmatprep.subr.mxu0 0.0
    %412 = vmatpush1.msra.mxu0 0.0
    %413 = vmatprep.subr.mxu0 0.0
    %414 = vmatpush1.msra.mxu0 0.0
    %415 = vmatprep.subr.mxu0 0.0
    %416 = vmatpush1.msra.mxu0 0.0
    %417 = vmatprep.subr.mxu0 0.0
    %418 = vmatpush1.msra.mxu0 0.0
    %419 = vmatprep.subr.mxu0 0.0
    %420 = vmatpush1.msra.mxu0 0.0
    %421 = vmatprep.subr.mxu0 0.0
    %422 = vmatpush1.msra.mxu0 0.0
    %423 = vmatprep.mubr.f32.mxu0 0.0
    %424 = vmatmul.mubr.f32.gmra.mrb[0].mxu0 %v337
    %v425 = vpop.f32.mrb[0].mxu0
    %v426 = vadd.f32 %v358, %v425
    %v427 = vpop.f32.mrb[0].mxu0
    %428 = vdwg.mxu0
    %v429 = vmin.f32 %v426, 20.0
    %v430 = vmul.f32 %v429, 1.442695
    %v431 = vpow.pop %v430
    %v432 = vadd.f32 %v431, 2.0
    %v433 = vmul.f32 %v431, %v432
    %v434 = vmul.f32 %v426, %v433
    %v435 = vadd.f32 %v433, 2.0
    %v436 = vrcp.pop %v435
    %v437 = vmul.f32 %v434, %v436
    %s438 = scalar_lea.vmem [#allocation7], 256
    %v439 = vld [vmem:[%s438] sm:$0xff]
    %v440 = vld [vmem:[%s438 + $0x8] sm:$0xff]
    %v441 = vld [vmem:[%s438 + $0x10] sm:$0xff]
    %v442 = vld [vmem:[%s438 + $0x18] sm:$0xff]
    %v443 = vld [vmem:[%s438 + $0x20] sm:$0xff]
    %v444 = vld [vmem:[%s438 + $0x28] sm:$0xff]
    %v445 = vld [vmem:[%s438 + $0x30] sm:$0xff]
    %v446 = vld [vmem:[%s438 + $0x38] sm:$0xff]
    %v447 = vld [vmem:[%s438 + $0x40] sm:$0xff]
    %v448 = vld [vmem:[%s438 + $0x48] sm:$0xff]
    %v449 = vld [vmem:[%s438 + $0x50] sm:$0xff]
    %v450 = vld [vmem:[%s438 + $0x58] sm:$0xff]
    %v451 = vld [vmem:[%s438 + $0x60] sm:$0xff]
    %v452 = vld [vmem:[%s438 + $0x68] sm:$0xff]
    %v453 = vld [vmem:[%s438 + $0x70] sm:$0xff]
    %v454 = vld [vmem:[%s438 + $0x78] sm:$0xff]
    %v455 = vlaneseq
    %v456 = vshrl.u32 %v455, 7
    %v457 = vsub.s32 3, %v456
    %v458 = vrot.slane %v71, %v457
    %459 = vmatprep.subr.mxu0 0.0
    %460 = vmatpush1.msra.mxu0 %v439
    %461 = vmatprep.subr.mxu0 0.0
    %462 = vmatpush1.msra.mxu0 %v440
    %463 = vmatprep.subr.mxu0 0.0
    %464 = vmatpush1.msra.mxu0 %v441
    %465 = vmatprep.subr.mxu0 0.0
    %466 = vmatpush1.msra.mxu0 %v442
    %467 = vmatprep.subr.mxu0 0.0
    %468 = vmatpush1.msra.mxu0 %v443
    %469 = vmatprep.subr.mxu0 0.0
    %470 = vmatpush1.msra.mxu0 %v444
    %471 = vmatprep.subr.mxu0 0.0
    %472 = vmatpush1.msra.mxu0 %v445
    %473 = vmatprep.subr.mxu0 0.0
    %474 = vmatpush1.msra.mxu0 %v446
    %475 = vmatprep.subr.mxu0 0.0
    %476 = vmatpush1.msra.mxu0 %v447
    %477 = vmatprep.subr.mxu0 0.0
    %478 = vmatpush1.msra.mxu0 %v448
    %479 = vmatprep.subr.mxu0 0.0
    %480 = vmatpush1.msra.mxu0 %v449
    %481 = vmatprep.subr.mxu0 0.0
    %482 = vmatpush1.msra.mxu0 %v450
    %483 = vmatprep.subr.mxu0 0.0
    %484 = vmatpush1.msra.mxu0 %v451
    %485 = vmatprep.subr.mxu0 0.0
    %486 = vmatpush1.msra.mxu0 %v452
    %487 = vmatprep.subr.mxu0 0.0
    %488 = vmatpush1.msra.mxu0 %v453
    %489 = vmatprep.subr.mxu0 0.0
    %490 = vmatpush1.msra.mxu0 %v454
    %491 = vmatprep.subr.mxu0 0.0
    %492 = vmatpush1.msra.mxu0 0.0
    %493 = vmatprep.subr.mxu0 0.0
    %494 = vmatpush1.msra.mxu0 0.0
    %495 = vmatprep.subr.mxu0 0.0
    %496 = vmatpush1.msra.mxu0 0.0
    %497 = vmatprep.subr.mxu0 0.0
    %498 = vmatpush1.msra.mxu0 0.0
    %499 = vmatprep.subr.mxu0 0.0
    %500 = vmatpush1.msra.mxu0 0.0
    %501 = vmatprep.subr.mxu0 0.0
    %502 = vmatpush1.msra.mxu0 0.0
    %503 = vmatprep.subr.mxu0 0.0
    %504 = vmatpush1.msra.mxu0 0.0
    %505 = vmatprep.subr.mxu0 0.0
    %506 = vmatpush1.msra.mxu0 0.0
    %507 = vmatprep.subr.mxu0 0.0
    %508 = vmatpush1.msra.mxu0 0.0
    %509 = vmatprep.subr.mxu0 0.0
    %510 = vmatpush1.msra.mxu0 0.0
    %511 = vmatprep.subr.mxu0 0.0
    %512 = vmatpush1.msra.mxu0 0.0
    %513 = vmatprep.subr.mxu0 0.0
    %514 = vmatpush1.msra.mxu0 0.0
    %515 = vmatprep.subr.mxu0 0.0
    %516 = vmatpush1.msra.mxu0 0.0
    %517 = vmatprep.subr.mxu0 0.0
    %518 = vmatpush1.msra.mxu0 0.0
    %519 = vmatprep.subr.mxu0 0.0
    %520 = vmatpush1.msra.mxu0 0.0
    %521 = vmatprep.subr.mxu0 0.0
    %522 = vmatpush1.msra.mxu0 0.0
    %523 = vmatprep.mubr.f32.mxu0 0.0
    %524 = vmatmul.mubr.f32.gmra.mrb[0].mxu0 %v437
    %v525 = vpop.f32.mrb[0].mxu0
    %v526 = vadd.f32 %v458, %v525
    %v527 = vpop.f32.mrb[0].mxu0
    %528 = vdwg.mxu0
    %v529 = vlaneseq
    %v530 = vand.u32 %v529, 127
    %vm531 = vcmp.lt.s32.totalorder %v530, 5
    %vm532 = vcmp.lt.s32.totalorder %v530, 10
    %v533 = vsel %vm531, %v526, -inf
    %534 = vmax.xlane.f32.xlu0 %v533
    %v535 = vpop.xlane.xlu0 %534
    %vm536 = vmxor %vm531, 1
    %vm537 = vmand %vm532, %vm536
    %v538 = vsel %vm537, %v526, -inf
    %539 = vmax.xlane.f32.xlu0 %v538
    %v540 = vpop.xlane.xlu0 %539
    %v541 = vsel %vm531, %v535, %v540
    %v542 = vsub.f32 %v526, %v541
    %v543 = vsel %vm532, %v542, -inf
    %v544 = vmul.f32 %v543, 1.442695
    %v545 = vpow.pop %v544
    %v546 = vsel %vm531, %v545, 0.0
    %547 = vadd.xlane.f32.xlu0 %v546
    %v548 = vpop.xlane.xlu0 %547
    %549 = vadd.xlane.f32.xlu0 %v545
    %v550 = vpop.xlane.xlu0 %549
    %v551 = vsub.f32 %v550, %v548
    %v552 = vsel %vm531, %v548, %v551
    %v553 = vrcp.pop %v552
    %v554 = vmul.f32 %v545, %v553
    %555 = vst [vmem:[%s5] sm:$0xff] %v554
    // Predicated region
    $region38: #{critic_forward.1} parent=1 // pred_check
      _
    $region39: #{critic_forward.1} parent=1 // pred_check_branch
      %557 = sbr.rel (0) target = $region41
    $region40: #{critic_forward.1} parent=1 // pred_region
      _
    $region41: #{critic_forward.1} parent=1 // pred_fallthru
      _
    // Predicated region
    $region42: #{critic_forward.1} parent=1 // pred_check
      _
    $region43: #{critic_forward.1} parent=1 // pred_check_branch
      %559 = sbr.rel (0) target = $region45
    $region44: #{critic_forward.1} parent=1 // pred_region
      _
    $region45: #{critic_forward.1} parent=1 // pred_fallthru
      _
    %560 = vsyncpa [#allocation3], 1
    %561 = vsyncpa [#allocation5], 1
    %562 = vsyncpa [#allocation8], 1

</llo_original>
